<compile_context>
chip_gen: v6e
topology: v6e:2x2x1
jax: 0.10.0
libtpu: 0.0.40
codegen_flags: <defaults>
</compile_context>

<pallas_src>
import functools

import jax
import jax.numpy as jnp
from jax.experimental import pallas as pl
from jax.experimental.pallas import tpu as pltpu

EPS = 1e-5
LANE = 128


def _round_up(x, m):
    return (x + m - 1) // m * m


# ---------------------------------------------------------------------------
# Pass 1: conv matmuls + per-channel sum / sum-of-squares accumulation.
# ---------------------------------------------------------------------------
def _pass1_kernel(sc_start, cin, patches_ref, wmain_ref, wsc_ref,
                  ymain_ref, ysc_ref, stats_ref):
    @pl.when(pl.program_id(0) == 0)
    def _init():
        stats_ref[...] = jnp.zeros_like(stats_ref)

    patches = patches_ref[...]                                  # (TILE_M, K)
    ymain = jnp.dot(patches, wmain_ref[...],
                    preferred_element_type=jnp.float32)         # 3x3 conv (im2col)
    x_sc = patches[:, sc_start:sc_start + cin]                  # 1x1 operand (center tap)
    ysc = jnp.dot(x_sc, wsc_ref[...],
                  preferred_element_type=jnp.float32)           # 1x1 conv / identity

    ymain_ref[...] = ymain
    ysc_ref[...] = ysc

    # Per-channel sum and sum-of-squares for both paths, accumulated across M tiles.
    stats_ref[...] += jnp.concatenate(
        [jnp.sum(ymain, axis=0, keepdims=True),
         jnp.sum(ymain * ymain, axis=0, keepdims=True),
         jnp.sum(ysc, axis=0, keepdims=True),
         jnp.sum(ysc * ysc, axis=0, keepdims=True)], axis=0)


# ---------------------------------------------------------------------------
# Pass 2: folded-BN FMA per path + residual add + ReLU (mem-bound, lane-dense).
# ---------------------------------------------------------------------------
def _pass2_kernel(ymain_ref, ysc_ref, sb_ref, out_ref):
    scale_m = sb_ref[0:1, :]
    scale_s = sb_ref[1:2, :]
    bias = sb_ref[2:3, :]
    out_ref[...] = jnp.maximum(
        ymain_ref[...] * scale_m + ysc_ref[...] * scale_s + bias, 0.0)


def _im2col_3x3(x_nhwc, padding, stride):
    N, H, W, C = x_nhwc.shape
    xp = jnp.pad(x_nhwc, ((0, 0), (padding, padding), (padding, padding), (0, 0)))
    Ho = (H + 2 * padding - 3) // stride + 1
    Wo = (W + 2 * padding - 3) // stride + 1
    cols = []
    for dy in range(3):
        for dx in range(3):
            cols.append(xp[:, dy:dy + (Ho - 1) * stride + 1:stride,
                           dx:dx + (Wo - 1) * stride + 1:stride, :])
    patches = jnp.concatenate(cols, axis=-1)                    # (N, Ho, Wo, 9*C)
    return patches.reshape(N * Ho * Wo, 9 * C), Ho, Wo


def resnet_conv_block(x_nchw, params, stride=1, padding=1, *,
                      tile_m=512, compute_dtype=jnp.float32):
    """Forward pass of ResNetConvBlok. x is NCHW (PyTorch layout)."""
    N, Cin, H, W = x_nchw.shape
    Cout = params["g_main"].shape[0]
    has_projection = (stride != 1) or (Cin != Cout)

    x = jnp.transpose(x_nchw, (0, 2, 3, 1)).astype(jnp.float32)  # NHWC

    patches, Ho, Wo = _im2col_3x3(x, padding, stride)            # (M, 9*Cin)
    M = N * Ho * Wo

    if padding == 1:
        # Center tap of the 3x3 window == strided input pixel -> no extra HBM stream.
        sc_start = 4 * Cin
    else:
        # Shortcut input is not a tap of the window: append it as extra columns.
        x_sc = x[:, :(Ho - 1) * stride + 1:stride,
                 :(Wo - 1) * stride + 1:stride, :].reshape(M, Cin)
        patches = jnp.concatenate([patches, x_sc], axis=-1)
        sc_start = 9 * Cin
    K = patches.shape[-1]

    # Lane-dense output channels (multiple of 128) -> unmasked stores, full MXU cols.
    Coutp = _round_up(Cout, LANE)

    # Row tiling over M (each tile double-buffered by the BlockSpec pipeline).
    tile_m = _round_up(max(8, min(tile_m, _round_up(M, 8))), 8)
    Mp = _round_up(M, tile_m)                                    # zero rows -> 0 stats
    n_tiles = Mp // tile_m

    patches = jnp.pad(patches, ((0, Mp - M), (0, 0))).astype(compute_dtype)

    w_main = jnp.pad(params["w_main"].reshape(9 * Cin, Cout).astype(jnp.float32),
                     ((0, 0), (0, Coutp - Cout))).astype(compute_dtype)
    if has_projection:
        w_sc = params["w_sc"].astype(jnp.float32)
    else:
        w_sc = jnp.eye(Cin, dtype=jnp.float32)                   # identity shortcut
    w_sc = jnp.pad(w_sc, ((0, 0), (0, Coutp - Cout))).astype(compute_dtype)

    vmem_limit = 32 * 1024 * 1024   # explicit scoped-VMEM limit with headroom (all gens)

    y_main, y_sc, stats = pl.pallas_call(
        functools.partial(_pass1_kernel, sc_start, Cin),
        grid=(n_tiles,),
        in_specs=[
            pl.BlockSpec((tile_m, K), lambda i: (i, 0)),          # patches row tile
            pl.BlockSpec((9 * Cin, Coutp), lambda i: (0, 0)),     # resident weight
            pl.BlockSpec((Cin, Coutp), lambda i: (0, 0)),         # resident weight
        ],
        out_specs=(
            pl.BlockSpec((tile_m, Coutp), lambda i: (i, 0)),      # y_main (fp32)
            pl.BlockSpec((tile_m, Coutp), lambda i: (i, 0)),      # y_sc (fp32)
            pl.BlockSpec((4, Coutp), lambda i: (0, 0)),           # resident stats acc
        ),
        out_shape=(
            jax.ShapeDtypeStruct((Mp, Coutp), jnp.float32),
            jax.ShapeDtypeStruct((Mp, Coutp), jnp.float32),
            jax.ShapeDtypeStruct((4, Coutp), jnp.float32),
        ),
        compiler_params=pltpu.CompilerParams(
            dimension_semantics=("arbitrary",),                   # stats reduce over M
            vmem_limit_bytes=vmem_limit),
    )(patches, w_main, w_sc)

    # Fold BN into one scale/bias per path (tiny O(Cout) work, done exactly once).
    inv_m = jnp.float32(1.0 / M)           # true M: zero-padded rows contribute nothing
    pad_c = (0, Coutp - Cout)
    g_main = jnp.pad(params["g_main"].astype(jnp.float32), pad_c)
    b_main = jnp.pad(params["b_main"].astype(jnp.float32), pad_c)

    mean_m = stats[0] * inv_m
    var_m = jnp.maximum(stats[1] * inv_m - mean_m * mean_m, 0.0)  # clamp cancellation
    scale_m = g_main * jax.lax.rsqrt(var_m + EPS)
    bias_m = b_main - mean_m * scale_m

    if has_projection:
        g_sc = jnp.pad(params["g_sc"].astype(jnp.float32), pad_c)
        b_sc = jnp.pad(params["b_sc"].astype(jnp.float32), pad_c)
        mean_s = stats[2] * inv_m
        var_s = jnp.maximum(stats[3] * inv_m - mean_s * mean_s, 0.0)
        scale_s = g_sc * jax.lax.rsqrt(var_s + EPS)
        bias_s = b_sc - mean_s * scale_s
    else:
        scale_s = jnp.ones((Coutp,), jnp.float32)                 # identity, no BN
        bias_s = jnp.zeros((Coutp,), jnp.float32)

    sb = jnp.stack([scale_m, scale_s, bias_m + bias_s], axis=0)   # (3, Coutp)

    out_flat = pl.pallas_call(
        _pass2_kernel,
        grid=(n_tiles,),
        in_specs=[
            pl.BlockSpec((tile_m, Coutp), lambda i: (i, 0)),
            pl.BlockSpec((tile_m, Coutp), lambda i: (i, 0)),
            pl.BlockSpec((3, Coutp), lambda i: (0, 0)),           # resident scale/bias
        ],
        out_specs=pl.BlockSpec((tile_m, Coutp), lambda i: (i, 0)),
        out_shape=jax.ShapeDtypeStruct((Mp, Coutp), jnp.float32),
        compiler_params=pltpu.CompilerParams(
            dimension_semantics=("parallel",),                    # both TCs on v7x
            vmem_limit_bytes=vmem_limit),
    )(y_main, y_sc, sb)

    out = out_flat[:M, :Cout].reshape(N, Ho, Wo, Cout)
    return jnp.transpose(out, (0, 3, 1, 2))                       # back to NCHW


def init_params(key, in_channels, out_channels):
    k1, k2 = jax.random.split(key)
    scale_m = 1.0 / jnp.sqrt(9.0 * in_channels)
    scale_s = 1.0 / jnp.sqrt(1.0 * in_channels)
    return {
        # main 3x3 conv weight in HWIO layout
        "w_main": scale_m * jax.random.normal(k1, (3, 3, in_channels, out_channels), jnp.float32),
        # shortcut 1x1 conv weight (Cin, Cout) -- ignored when the shortcut is identity
        "w_sc": scale_s * jax.random.normal(k2, (in_channels, out_channels), jnp.float32),
        # BatchNorm affine params (PyTorch default init: gamma=1, beta=0)
        "g_main": jnp.ones((out_channels,), jnp.float32),
        "b_main": jnp.zeros((out_channels,), jnp.float32),
        "g_sc": jnp.ones((out_channels,), jnp.float32),
        "b_sc": jnp.zeros((out_channels,), jnp.float32),
    }


def _reference(x_nchw, params, stride=1, padding=1):
    # pure-JAX reference for correctness checking
    N, Cin, H, W = x_nchw.shape
    Cout = params["g_main"].shape[0]
    x = jnp.transpose(x_nchw, (0, 2, 3, 1)).astype(jnp.float32)
    dn = ("NHWC", "HWIO", "NHWC")

    def bn(y, g, b):
        mean = jnp.mean(y, axis=(0, 1, 2), keepdims=True)
        var = jnp.mean((y - mean) ** 2, axis=(0, 1, 2), keepdims=True)
        return (y - mean) * jax.lax.rsqrt(var + EPS) * g + b

    main = jax.lax.conv_general_dilated(x, params["w_main"], (stride, stride),
                                        [(padding, padding)] * 2,
                                        dimension_numbers=dn)
    main = bn(main, params["g_main"], params["b_main"])

    if stride != 1 or Cin != Cout:
        sc = jax.lax.conv_general_dilated(x, params["w_sc"][None, None],
                                          (stride, stride), [(0, 0)] * 2,
                                          dimension_numbers=dn)
        sc = bn(sc, params["g_sc"], params["b_sc"])
    else:
        sc = x

    out = jnp.maximum(main + sc, 0.0)
    return jnp.transpose(out, (0, 3, 1, 2))


if __name__ == "__main__":
    key = jax.random.PRNGKey(0)
    kx, kp = jax.random.split(key)

    N, Cin, Cout, H, W = 2, 4, 8, 16, 16
    x = jax.random.normal(kx, (N, Cin, H, W), jnp.float32)
    params = init_params(kp, Cin, Cout)

    # 1) projection shortcut, stride 1, fp32, multi-tile M grid (exercises stats acc)
    out = jax.block_until_ready(
        resnet_conv_block(x, params, stride=1, padding=1, tile_m=128))
    ref = jax.block_until_ready(_reference(x, params, stride=1, padding=1))
    assert out.shape == (N, Cout, H, W), out.shape
    assert jnp.allclose(out, ref, atol=1e-4, rtol=1e-4), float(jnp.max(jnp.abs(out - ref)))

    # 2) projection shortcut, stride 2
    out2 = jax.block_until_ready(
        resnet_conv_block(x, params, stride=2, padding=1, tile_m=128))
    ref2 = jax.block_until_ready(_reference(x, params, stride=2, padding=1))
    assert out2.shape == (N, Cout, H // 2, W // 2), out2.shape
    assert jnp.allclose(out2, ref2, atol=1e-4, rtol=1e-4), float(jnp.max(jnp.abs(out2 - ref2)))

    # 3) identity shortcut (in_channels == out_channels, stride 1)
    params_id = init_params(kp, Cin, Cin)
    out3 = jax.block_until_ready(
        resnet_conv_block(x, params_id, stride=1, padding=1, tile_m=128))
    ref3 = jax.block_until_ready(_reference(x, params_id, stride=1, padding=1))
    assert out3.shape == (N, Cin, H, W), out3.shape
    assert jnp.allclose(out3, ref3, atol=1e-4, rtol=1e-4), float(jnp.max(jnp.abs(out3 - ref3)))

    # 4) bf16 MXU operands (fp32 accumulation + fp32 BN/add/ReLU), looser tolerance
    out4 = jax.block_until_ready(
        resnet_conv_block(x, params, stride=1, padding=1, tile_m=128,
                          compute_dtype=jnp.bfloat16))
    assert jnp.allclose(out4, ref, atol=5e-2, rtol=5e-2), float(jnp.max(jnp.abs(out4 - ref)))

    print("KERNEL_OK")
</pallas_src>

<mosaic_0001>
module attributes {stable_mosaic.version = 11 : i64} {
  func.func @_pass1_kernel(%arg0: i32, %arg1: memref<128x36xf32, #tpu.memory_space<vmem>>, %arg2: memref<36x128xf32, #tpu.memory_space<vmem>>, %arg3: memref<4x128xf32, #tpu.memory_space<vmem>>, %arg4: memref<128x128xf32, #tpu.memory_space<vmem>>, %arg5: memref<128x128xf32, #tpu.memory_space<vmem>>, %arg6: memref<4x128xf32, #tpu.memory_space<vmem>>) attributes {dimension_semantics = [#tpu.dimension_semantics<arbitrary>], iteration_bounds = array<i64: 4>, scalar_prefetch = 0 : i64, scratch_operands = 0 : i64, tpu.core_type = #tpu.core_type<tc>, window_params = [{transform_indices = @transform_0, window_bounds = array<i64: 128, 36>}, {pipeline_mode = #tpu.pipeline_mode<synchronous>, transform_indices = @transform_1, window_bounds = array<i64: 36, 128>}, {pipeline_mode = #tpu.pipeline_mode<synchronous>, transform_indices = @transform_2, window_bounds = array<i64: 4, 128>}, {transform_indices = @transform_3, window_bounds = array<i64: 128, 128>}, {transform_indices = @transform_4, window_bounds = array<i64: 128, 128>}, {pipeline_mode = #tpu.pipeline_mode<synchronous>, transform_indices = @transform_5, window_bounds = array<i64: 4, 128>}]} {
    %c0_i32 = arith.constant 0 : i32
    %0 = arith.cmpi eq, %arg0, %c0_i32 : i32
    %1 = arith.extui %0 : i1 to i32
    %c0_i32_0 = arith.constant 0 : i32
    %2 = arith.cmpi ne, %1, %c0_i32_0 : i32
    scf.if %2 {
      %cst_19 = arith.constant 0.000000e+00 : f32
      %25 = vector.broadcast %cst_19 : f32 to vector<4x128xf32>
      %c0_20 = arith.constant 0 : index
      %c0_21 = arith.constant 0 : index
      %26 = vector.load %arg6[%c0_20, %c0_21] : memref<4x128xf32, #tpu.memory_space<vmem>>, vector<4x128xf32>
      tpu.vector_store %arg6[%c0_20, %c0_21], %25 {strides = array<i32>} : memref<4x128xf32, #tpu.memory_space<vmem>>, vector<4x128xf32>,
    } else {
    }
    %c0 = arith.constant 0 : index
    %c0_1 = arith.constant 0 : index
    %3 = vector.load %arg1[%c0, %c0_1] : memref<128x36xf32, #tpu.memory_space<vmem>>, vector<128x36xf32>
    %c0_2 = arith.constant 0 : index
    %c0_3 = arith.constant 0 : index
    %4 = vector.load %arg2[%c0_2, %c0_3] : memref<36x128xf32, #tpu.memory_space<vmem>>, vector<36x128xf32>
    %cst = arith.constant dense<0.000000e+00> : vector<128x128xf32>
    %5 = tpu.matmul %3, %4, %cst {dimension_numbers = #tpu.dot_dimension_numbers<[1], [0], [0], [1], [0, 0, 1, 1], [], []>} : vector<128x36xf32>, vector<36x128xf32>, vector<128x128xf32> -> vector<128x128xf32>
    %6 = vector.extract_strided_slice %3 {offsets = [0, 16], sizes = [128, 4], strides = [1, 1]} : vector<128x36xf32> to vector<128x4xf32>
    %c0_4 = arith.constant 0 : index
    %c0_5 = arith.constant 0 : index
    %7 = vector.load %arg3[%c0_4, %c0_5] : memref<4x128xf32, #tpu.memory_space<vmem>>, vector<4x128xf32>
    %cst_6 = arith.constant dense<0.000000e+00> : vector<128x128xf32>
    %8 = tpu.matmul %6, %7, %cst_6 {dimension_numbers = #tpu.dot_dimension_numbers<[1], [0], [0], [1], [0, 0, 1, 1], [], []>} : vector<128x4xf32>, vector<4x128xf32>, vector<128x128xf32> -> vector<128x128xf32>
    %c0_7 = arith.constant 0 : index
    %c0_8 = arith.constant 0 : index
    %9 = vector.load %arg4[%c0_7, %c0_8] : memref<128x128xf32, #tpu.memory_space<vmem>>, vector<128x128xf32>
    tpu.vector_store %arg4[%c0_7, %c0_8], %5 {strides = array<i32>} : memref<128x128xf32, #tpu.memory_space<vmem>>, vector<128x128xf32>,
    %c0_9 = arith.constant 0 : index
    %c0_10 = arith.constant 0 : index
    %10 = vector.load %arg5[%c0_9, %c0_10] : memref<128x128xf32, #tpu.memory_space<vmem>>, vector<128x128xf32>
    tpu.vector_store %arg5[%c0_9, %c0_10], %8 {strides = array<i32>} : memref<128x128xf32, #tpu.memory_space<vmem>>, vector<128x128xf32>,
    %c0_11 = arith.constant 0 : index
    %c0_12 = arith.constant 0 : index
    %11 = vector.load %arg6[%c0_11, %c0_12] : memref<4x128xf32, #tpu.memory_space<vmem>>, vector<4x128xf32>
    %cst_13 = arith.constant dense<0.000000e+00> : vector<128xf32>
    %12 = vector.multi_reduction <add>, %5, %cst_13 [0] : vector<128x128xf32> to vector<128xf32>
    %13 = vector.shape_cast %12 : vector<128xf32> to vector<1x128xf32>
    %14 = arith.mulf %5, %5 : vector<128x128xf32>
    %cst_14 = arith.constant dense<0.000000e+00> : vector<128xf32>
    %15 = vector.multi_reduction <add>, %14, %cst_14 [0] : vector<128x128xf32> to vector<128xf32>
    %16 = vector.shape_cast %15 : vector<128xf32> to vector<1x128xf32>
    %cst_15 = arith.constant dense<0.000000e+00> : vector<128xf32>
    %17 = vector.multi_reduction <add>, %8, %cst_15 [0] : vector<128x128xf32> to vector<128xf32>
    %18 = vector.shape_cast %17 : vector<128xf32> to vector<1x128xf32>
    %19 = arith.mulf %8, %8 : vector<128x128xf32>
    %cst_16 = arith.constant dense<0.000000e+00> : vector<128xf32>
    %20 = vector.multi_reduction <add>, %19, %cst_16 [0] : vector<128x128xf32> to vector<128xf32>
    %21 = vector.shape_cast %20 : vector<128xf32> to vector<1x128xf32>
    %22 = tpu.concatenate %13, %16, %18, %21 in 0 : vector<1x128xf32>, vector<1x128xf32>, vector<1x128xf32>, vector<1x128xf32> -> vector<4x128xf32>
    %23 = arith.addf %11, %22 : vector<4x128xf32>
    %c0_17 = arith.constant 0 : index
    %c0_18 = arith.constant 0 : index
    %24 = vector.load %arg6[%c0_17, %c0_18] : memref<4x128xf32, #tpu.memory_space<vmem>>, vector<4x128xf32>
    tpu.vector_store %arg6[%c0_17, %c0_18], %23 {strides = array<i32>} : memref<4x128xf32, #tpu.memory_space<vmem>>, vector<4x128xf32>,
    return
  }
  func.func @transform_0(%arg0: i32) -> (i32, i32) {
    %c0_i32 = arith.constant 0 : i32
    %c0_i32_0 = arith.constant 0 : i32
    return %arg0, %c0_i32 : i32, i32
  }
  func.func @transform_1(%arg0: i32) -> (i32, i32) {
    %c0_i32 = arith.constant 0 : i32
    %c0_i32_0 = arith.constant 0 : i32
    %c0_i32_1 = arith.constant 0 : i32
    return %c0_i32, %c0_i32_0 : i32, i32
  }
  func.func @transform_2(%arg0: i32) -> (i32, i32) {
    %c0_i32 = arith.constant 0 : i32
    %c0_i32_0 = arith.constant 0 : i32
    %c0_i32_1 = arith.constant 0 : i32
    return %c0_i32, %c0_i32_0 : i32, i32
  }
  func.func @transform_3(%arg0: i32) -> (i32, i32) {
    %c0_i32 = arith.constant 0 : i32
    %c0_i32_0 = arith.constant 0 : i32
    return %arg0, %c0_i32 : i32, i32
  }
  func.func @transform_4(%arg0: i32) -> (i32, i32) {
    %c0_i32 = arith.constant 0 : i32
    %c0_i32_0 = arith.constant 0 : i32
    return %arg0, %c0_i32 : i32, i32
  }
  func.func @transform_5(%arg0: i32) -> (i32, i32) {
    %c0_i32 = arith.constant 0 : i32
    %c0_i32_0 = arith.constant 0 : i32
    %c0_i32_1 = arith.constant 0 : i32
    return %c0_i32, %c0_i32_0 : i32, i32
  }
}

</mosaic_0001>

<llo_original>
// kernel: tpu_custom_call.1
$region0: #{tpu_custom_call.1}
  #allocation0 [shape = 'u32[]', space=smem, size = 0x4, offset = 0x4, fixed_abs, tag = 'smem constant byte address 0x4 - core index']
  #allocation1 [shape = 'u32[144,128]{1,0:T(1,128)}', space=vmem, size = 0x12000, scoped, tag = 'internal scratch']
  %s0 = inlined_call_operand.vmem [shape: f32[512,36], index: 0, kind: input, shape index: {}]
  %s1 = inlined_call_operand.vmem [shape: f32[36,128], index: 1, kind: input, shape index: {}]
  %s2 = inlined_call_operand.vmem [shape: f32[4,128], index: 2, kind: input, shape index: {}]
  %s3 = inlined_call_operand.hbm [shape: f32[512,128], index: 3, kind: output, shape index: {0}]
  %s4 = inlined_call_operand.hbm [shape: f32[512,128], index: 4, kind: output, shape index: {1}]
  %s5 = inlined_call_operand.hbm [shape: f32[4,128], index: 5, kind: output, shape index: {2}]
  %6 = xla_tuple %s3, %s4, %s5
  %s7 = sld [smem:[#allocation0]]
  $region65: #{tpu_custom_call.1} parent=0
    _
  %s9 = ssub.s32 1, %s7
  %s10 = scalar_select 0, %s9, %s7
  $region1: #{tpu_custom_call.1} parent=0
    #allocation2 [shape = 'u8[131072]{0}', space=vmem, size = 0x20000, scoped, tag = 'output window, operand 0']
    #allocation3 [shape = 's32[2]{0}', space=sflag, size = 0x8, scoped, tag = 'scoped memory for tpu_custom_call.1']
    #allocation4 [shape = 'u8[131072]{0}', space=vmem, size = 0x20000, scoped, tag = 'output window, operand 1']
    #allocation5 [shape = 's32[2]{0}', space=sflag, size = 0x8, scoped, tag = 'scoped memory for tpu_custom_call.1']
    #allocation6 [shape = 'u8[2048]{0}', space=vmem, size = 0x800, scoped, tag = 'output window, operand 2, single buffered']
    %11 = vsyncpa [#allocation3], 0
    %s12 = scalar_lea.sflag [#allocation3], 1
    %13 = vsyncpa %s12, 0
    %14 = vsyncpa [#allocation5], 0
    %s15 = scalar_lea.sflag [#allocation5], 1
    %16 = vsyncpa %s15, 0
    loop: start=0, step=1, limit=6
    $region2: #{tpu_custom_call.1} parent=1 // loop_pre_header
      _
    $region3: #{tpu_custom_call.1} parent=1 // loop_header
      %s18 = sphi 0, %s22
      %p19 = scmp.ge.s32.totalorder %s18, 6
      %s28 = sphi 0, %s30
      %s31 = sphi 0, %s28
      %s32 = sphi 0, %s31
      %s48 = sphi 0, %s32
      %s52 = sphi 0, %s52
      %s54 = sphi 0, %s52
      %s55 = sphi 0, %s54
      %s69 = sphi 0, %s55
      %s73 = sphi 0, %s73
      %s75 = sphi 0, %s73
      %s76 = sphi 0, %s75
      %s90 = sphi 0, %s76
      %s96 = sphi 0, %s98
      %s99 = sphi 0, %s96
      %s100 = sphi 0, %s99
      %s116 = sphi 0, %s100
      %s122 = sphi 0, %s124
      %s125 = sphi 0, %s122
      %s126 = sphi 0, %s125
      %s142 = sphi 0, %s126
      %s146 = sphi 0, %s146
      %s148 = sphi 0, %s146
      %s149 = sphi 0, %s148
      %s163 = sphi 0, %s149
    $region4: #{tpu_custom_call.1} parent=1 // loop_header_branch
      %21 = sbr.rel (%p19) target = $region8
    $region5: #{tpu_custom_call.1} parent=1 // loop_body
      %s23 = ssub.s32 %s18, 1
      %s24 = ssub.s32 %s18, 2
      %s25 = sadd.s32 %s18, 1
      %s26 = ssub.s32 %s18, %s25
      %p27 = scmp.eq.s32.totalorder %s26, 0
      %s29 = sadd.s32 %s28, 1
      %s30 = scalar_select %p27, %s28, %s29
      %p33 = pneg %p27
      %p34 = scmp.eq.s32.totalorder %s18, 3
      %p35 = por %p33, %p34
      %p36 = scmp.ne.s32.totalorder %s28, %s31
      %p37 = scmp.eq.s32.totalorder %s18, 0
      %p38 = por %p36, %p37
      %p39 = scmp.ne.s32.totalorder %s28, %s31
      %p40 = scmp.eq.s32.totalorder %s23, 3
      %p41 = por %p39, %p40
      %p42 = scmp.ne.s32.totalorder %s31, %s32
      %p43 = scmp.eq.s32.totalorder %s23, 0
      %p44 = por %p42, %p43
      %p45 = scmp.ne.s32.totalorder %s31, %s32
      %p46 = scmp.eq.s32.totalorder %s24, 3
      %p47 = por %p45, %p46
      %p49 = scmp.ne.s32.totalorder %s32, %s48
      %p50 = scmp.eq.s32.totalorder %s24, 0
      %p51 = por %p49, %p50
      %s53 = sadd.s32 %s52, 1
      %p56 = scmp.eq.s32.totalorder %s18, 3
      %p57 = scmp.ne.s32.totalorder %s52, %s54
      %p58 = scmp.eq.s32.totalorder %s18, 0
      %p59 = por %p57, %p58
      %p60 = scmp.ne.s32.totalorder %s52, %s54
      %p61 = scmp.eq.s32.totalorder %s23, 3
      %p62 = por %p60, %p61
      %p63 = scmp.ne.s32.totalorder %s54, %s55
      %p64 = scmp.eq.s32.totalorder %s23, 0
      %p65 = por %p63, %p64
      %p66 = scmp.ne.s32.totalorder %s54, %s55
      %p67 = scmp.eq.s32.totalorder %s24, 3
      %p68 = por %p66, %p67
      %p70 = scmp.ne.s32.totalorder %s55, %s69
      %p71 = scmp.eq.s32.totalorder %s24, 0
      %p72 = por %p70, %p71
      %s74 = sadd.s32 %s73, 1
      %p77 = scmp.eq.s32.totalorder %s18, 3
      %p78 = scmp.ne.s32.totalorder %s73, %s75
      %p79 = scmp.eq.s32.totalorder %s18, 0
      %p80 = por %p78, %p79
      %p81 = scmp.ne.s32.totalorder %s73, %s75
      %p82 = scmp.eq.s32.totalorder %s23, 3
      %p83 = por %p81, %p82
      %p84 = scmp.ne.s32.totalorder %s75, %s76
      %p85 = scmp.eq.s32.totalorder %s23, 0
      %p86 = por %p84, %p85
      %p87 = scmp.ne.s32.totalorder %s75, %s76
      %p88 = scmp.eq.s32.totalorder %s24, 3
      %p89 = por %p87, %p88
      %p91 = scmp.ne.s32.totalorder %s76, %s90
      %p92 = scmp.eq.s32.totalorder %s24, 0
      %p93 = por %p91, %p92
      %s94 = ssub.s32 %s18, %s25
      %p95 = scmp.eq.s32.totalorder %s94, 0
      %s97 = sadd.s32 %s96, 1
      %s98 = scalar_select %p95, %s96, %s97
      %p101 = pneg %p95
      %p102 = scmp.eq.s32.totalorder %s18, 3
      %p103 = por %p101, %p102
      %p104 = scmp.ne.s32.totalorder %s96, %s99
      %p105 = scmp.eq.s32.totalorder %s18, 0
      %p106 = por %p104, %p105
      %p107 = scmp.ne.s32.totalorder %s96, %s99
      %p108 = scmp.eq.s32.totalorder %s23, 3
      %p109 = por %p107, %p108
      %p110 = scmp.ne.s32.totalorder %s99, %s100
      %p111 = scmp.eq.s32.totalorder %s23, 0
      %p112 = por %p110, %p111
      %p113 = scmp.ne.s32.totalorder %s99, %s100
      %p114 = scmp.eq.s32.totalorder %s24, 3
      %p115 = por %p113, %p114
      %p117 = scmp.ne.s32.totalorder %s100, %s116
      %p118 = scmp.eq.s32.totalorder %s24, 0
      %p119 = por %p117, %p118
      %s120 = ssub.s32 %s18, %s25
      %p121 = scmp.eq.s32.totalorder %s120, 0
      %s123 = sadd.s32 %s122, 1
      %s124 = scalar_select %p121, %s122, %s123
      %p127 = pneg %p121
      %p128 = scmp.eq.s32.totalorder %s18, 3
      %p129 = por %p127, %p128
      %p130 = scmp.ne.s32.totalorder %s122, %s125
      %p131 = scmp.eq.s32.totalorder %s18, 0
      %p132 = por %p130, %p131
      %p133 = scmp.ne.s32.totalorder %s122, %s125
      %p134 = scmp.eq.s32.totalorder %s23, 3
      %p135 = por %p133, %p134
      %p136 = scmp.ne.s32.totalorder %s125, %s126
      %p137 = scmp.eq.s32.totalorder %s23, 0
      %p138 = por %p136, %p137
      %p139 = scmp.ne.s32.totalorder %s125, %s126
      %p140 = scmp.eq.s32.totalorder %s24, 3
      %p141 = por %p139, %p140
      %p143 = scmp.ne.s32.totalorder %s126, %s142
      %p144 = scmp.eq.s32.totalorder %s24, 0
      %p145 = por %p143, %p144
      %s147 = sadd.s32 %s146, 1
      %p150 = scmp.eq.s32.totalorder %s18, 3
      %p151 = scmp.ne.s32.totalorder %s146, %s148
      %p152 = scmp.eq.s32.totalorder %s18, 0
      %p153 = por %p151, %p152
      %p154 = scmp.ne.s32.totalorder %s146, %s148
      %p155 = scmp.eq.s32.totalorder %s23, 3
      %p156 = por %p154, %p155
      %p157 = scmp.ne.s32.totalorder %s148, %s149
      %p158 = scmp.eq.s32.totalorder %s23, 0
      %p159 = por %p157, %p158
      %p160 = scmp.ne.s32.totalorder %s148, %s149
      %p161 = scmp.eq.s32.totalorder %s24, 3
      %p162 = por %p160, %p161
      %p164 = scmp.ne.s32.totalorder %s149, %s163
      %p165 = scmp.eq.s32.totalorder %s24, 0
      %p166 = por %p164, %p165
      %p167 = scmp.le.s32.totalorder 1, %s18
      %p168 = scmp.lt.s32.totalorder %s18, 5
      %p169 = pnand %p167, %p168
      %p170 = pneg %p169
      // Predicated region
      $region9: #{tpu_custom_call.1} parent=5 // pred_check
        _
      $region10: #{tpu_custom_call.1} parent=5 // pred_check_branch
        %172 = sbr.rel (%p169) target = $region12
      $region11: #{tpu_custom_call.1} parent=5 // pred_region
        %s173 = ssub.s32 %s18, 1
        // Predicated region
        $region13: #{tpu_custom_call.1} parent=11 // pred_check
          %p174 = pneg %p65
        $region14: #{tpu_custom_call.1} parent=11 // pred_check_branch
          %176 = sbr.rel (%p174) target = $region16
        $region15: #{tpu_custom_call.1} parent=11 // pred_region
          _
        $region16: #{tpu_custom_call.1} parent=11 // pred_fallthru
          _
        // Predicated region
        $region17: #{tpu_custom_call.1} parent=11 // pred_check
          %p177 = pneg %p86
        $region18: #{tpu_custom_call.1} parent=11 // pred_check_branch
          %179 = sbr.rel (%p177) target = $region20
        $region19: #{tpu_custom_call.1} parent=11 // pred_region
          _
        $region20: #{tpu_custom_call.1} parent=11 // pred_fallthru
          _
      $region12: #{tpu_custom_call.1} parent=5 // pred_fallthru
        _
      %p180 = scmp.lt.s32.totalorder %s18, 4
      // Predicated region
      $region21: #{tpu_custom_call.1} parent=5 // pred_check
        %p181 = pneg %p180
      $region22: #{tpu_custom_call.1} parent=5 // pred_check_branch
        %183 = sbr.rel (%p181) target = $region24
      $region23: #{tpu_custom_call.1} parent=5 // pred_region
        // Predicated region
        $region25: #{tpu_custom_call.1} parent=23 // pred_check
          %p184 = pneg %p38
        $region26: #{tpu_custom_call.1} parent=23 // pred_check_branch
          %186 = sbr.rel (%p184) target = $region28
        $region27: #{tpu_custom_call.1} parent=23 // pred_region
          %s187 = smul.u32 16, %s18
          %p188 = scmp.lt.s32.totalorder %s187, 63
          %s189 = scalar_select %p188, %s187, 63
          %s190 = smul.addr %s189, 8
          %s191 = scalar_lea.vmem %s0, %s190
          %s192 = smul.u32 16, %s18
        $region28: #{tpu_custom_call.1} parent=23 // pred_fallthru
          _
      $region24: #{tpu_custom_call.1} parent=5 // pred_fallthru
        _
      %p193 = scmp.le.s32.totalorder 1, %s18
      %p194 = scmp.lt.s32.totalorder %s18, 5
      %p195 = pnand %p193, %p194
      %p196 = pneg %p195
      // Predicated region
      $region29: #{tpu_custom_call.1} parent=5 // pred_check
        _
      $region30: #{tpu_custom_call.1} parent=5 // pred_check_branch
        %198 = sbr.rel (%p195) target = $region32
      $region31: #{tpu_custom_call.1} parent=5 // pred_region
        %s199 = ssub.s32 %s18, 1
        %s200 = smul.u32 16, %s23
        %p201 = scmp.lt.s32.totalorder %s200, 63
        %s202 = scalar_select %p201, %s200, 63
        %s203 = smul.addr %s202, 8
        %s204 = scalar_lea.vmem %s0, %s203
        %p205 = pneg %p44
        %p206 = pneg %p41
        %p207 = pneg %p65
        %p208 = pneg %p62
        %p209 = pneg %p86
        %p210 = pneg %p83
        %p211 = pneg %p112
        %p212 = pneg %p109
        %s213 = sand.u32 %s99, 1
        %s214 = scalar_lea.sflag [#allocation3], %s213
        %s215 = sand.u32 %s99, 1
        %s216 = smul.addr %s215, 128
        %s217 = scalar_lea.vmem [#allocation2], %s216
        %p218 = pneg %p138
        %p219 = pneg %p135
        %s220 = sand.u32 %s23, 1
        %s221 = scalar_lea.sflag [#allocation5], %s220
        %s222 = sand.u32 %s125, 1
        %s223 = smul.addr %s222, 128
        %s224 = scalar_lea.vmem [#allocation4], %s223
        %p225 = pneg %p159
        %p226 = pneg %p156
        %s227 = smul.u32 16, %s23
        %p228 = scmp.lt.s32.totalorder %s227, 63
        %s229 = scalar_select %p228, %s227, 63
        %s230 = smul.addr %s229, 8
        %s231 = scalar_lea.vmem %s0, %s230
        %s232 = smul.u32 16, %s23
        %s233 = smul.u32 16, %s23
        %s234 = smul.u32 16, %s23
        %p235 = scmp.eq.s32.totalorder %s23, 0
        // Predicated region
        $region33: #{tpu_custom_call.1} parent=31 // pred_check
          %p236 = pneg %p235
        $region34: #{tpu_custom_call.1} parent=31 // pred_check_branch
          %238 = sbr.rel (%p236) target = $region36
        $region35: #{tpu_custom_call.1} parent=31 // pred_region
          %239 = vst [vmem:[#allocation6] sm:$0xf] 0.0
        $region36: #{tpu_custom_call.1} parent=31 // pred_fallthru
          _
        %v240 = vld [vmem:[%s231] sm:$0xff]
        %v241 = vld [vmem:[%s231 + $0x8] sm:$0xff]
        %v242 = vld [vmem:[%s231 + $0x10] sm:$0xff]
        %v243 = vld [vmem:[%s231 + $0x18] sm:$0xff]
        %v244 = vld [vmem:[%s231 + $0x20] sm:$0xff]
        %v245 = vld [vmem:[%s231 + $0x28] sm:$0xff]
        %v246 = vld [vmem:[%s231 + $0x30] sm:$0xff]
        %v247 = vld [vmem:[%s231 + $0x38] sm:$0xff]
        %v248 = vld [vmem:[%s231 + $0x40] sm:$0xff]
        %v249 = vld [vmem:[%s231 + $0x48] sm:$0xff]
        %v250 = vld [vmem:[%s231 + $0x50] sm:$0xff]
        %v251 = vld [vmem:[%s231 + $0x58] sm:$0xff]
        %v252 = vld [vmem:[%s231 + $0x60] sm:$0xff]
        %v253 = vld [vmem:[%s231 + $0x68] sm:$0xff]
        %v254 = vld [vmem:[%s231 + $0x70] sm:$0xff]
        %v255 = vld [vmem:[%s231 + $0x78] sm:$0xff]
        %v256 = vld [vmem:[%s1] sm:$0xff]
        %v257 = vld [vmem:[%s1 + $0x8] sm:$0xff]
        %v258 = vld [vmem:[%s1 + $0x10] sm:$0xff]
        %v259 = vld [vmem:[%s1 + $0x18] sm:$0xff]
        %v260 = vld [vmem:[%s1 + $0x20] sm:$0xf]
        %vm261 = vcmask 293888
        %v263 = vsel %vm261, %v240, 0
        %v266 = vsel %vm261, %v241, 0
        %v269 = vsel %vm261, %v242, 0
        %v272 = vsel %vm261, %v243, 0
        %v275 = vsel %vm261, %v244, 0
        %v278 = vsel %vm261, %v245, 0
        %v281 = vsel %vm261, %v246, 0
        %v284 = vsel %vm261, %v247, 0
        %v287 = vsel %vm261, %v248, 0
        %v290 = vsel %vm261, %v249, 0
        %v293 = vsel %vm261, %v250, 0
        %v296 = vsel %vm261, %v251, 0
        %v299 = vsel %vm261, %v252, 0
        %v302 = vsel %vm261, %v253, 0
        %v305 = vsel %vm261, %v254, 0
        %v308 = vsel %vm261, %v255, 0
        %vm310 = vcmask 1043456
        %v312 = vsel %vm310, %v260, 0
        %314 = vmatprep.subr.mxu0 0.0
        %315 = vmatpush1.msra.mxu0 0.0
        %316 = vmatprep.subr.mxu0 0.0
        %317 = vmatpush1.msra.mxu0 0.0
        %318 = vmatprep.subr.mxu0 0.0
        %319 = vmatpush1.msra.mxu0 0.0
        %320 = vmatprep.subr.mxu0 0.0
        %321 = vmatpush1.msra.mxu0 0.0
        %322 = vmatprep.subr.mxu0 0.0
        %323 = vmatpush1.msra.mxu0 0.0
        %324 = vmatprep.subr.mxu0 0.0
        %325 = vmatpush1.msra.mxu0 0.0
        %326 = vmatprep.subr.mxu0 0.0
        %327 = vmatpush1.msra.mxu0 0.0
        %328 = vmatprep.subr.mxu0 0.0
        %329 = vmatpush1.msra.mxu0 0.0
        %330 = vmatprep.subr.mxu0 0.0
        %331 = vmatpush1.msra.mxu0 0.0
        %332 = vmatprep.subr.mxu0 0.0
        %333 = vmatpush1.msra.mxu0 0.0
        %334 = vmatprep.subr.mxu0 0.0
        %335 = vmatpush1.msra.mxu0 0.0
        %336 = vmatprep.subr.mxu0 0.0
        %337 = vmatpush1.msra.mxu0 %v312
        %338 = vmatprep.subr.mxu0 0.0
        %339 = vmatpush1.msra.mxu0 %v259
        %340 = vmatprep.subr.mxu0 0.0
        %341 = vmatpush1.msra.mxu0 %v258
        %342 = vmatprep.subr.mxu0 0.0
        %343 = vmatpush1.msra.mxu0 %v257
        %344 = vmatprep.subr.mxu0 0.0
        %345 = vmatpush1.msra.mxu0 %v256
        %346 = vmatprep.subr.mxu0 0.0
        %347 = vmatpush2.msra.mxu0 0.0
        %348 = vmatprep.subr.mxu0 0.0
        %349 = vmatpush2.msra.mxu0 0.0
        %350 = vmatprep.subr.mxu0 0.0
        %351 = vmatpush2.msra.mxu0 0.0
        %352 = vmatprep.subr.mxu0 0.0
        %353 = vmatpush2.msra.mxu0 0.0
        %354 = vmatprep.subr.mxu0 0.0
        %355 = vmatpush2.msra.mxu0 0.0
        %356 = vmatprep.subr.mxu0 0.0
        %357 = vmatpush2.msra.mxu0 0.0
        %358 = vmatprep.subr.mxu0 0.0
        %359 = vmatpush2.msra.mxu0 0.0
        %360 = vmatprep.subr.mxu0 0.0
        %361 = vmatpush2.msra.mxu0 0.0
        %362 = vmatprep.subr.mxu0 0.0
        %363 = vmatpush2.msra.mxu0 0.0
        %364 = vmatprep.subr.mxu0 0.0
        %365 = vmatpush2.msra.mxu0 0.0
        %366 = vmatprep.subr.mxu0 0.0
        %367 = vmatpush2.msra.mxu0 0.0
        %368 = vmatprep.subr.mxu0 0.0
        %369 = vmatpush2.msra.mxu0 0.0
        %370 = vmatprep.subr.mxu0 0.0
        %371 = vmatpush2.msra.mxu0 0.0
        %372 = vmatprep.subr.mxu0 0.0
        %373 = vmatpush2.msra.mxu0 0.0
        %374 = vmatprep.subr.mxu0 0.0
        %375 = vmatpush2.msra.mxu0 0.0
        %376 = vmatprep.subr.mxu0 0.0
        %377 = vmatpush2.msra.mxu0 0.0
        %378 = vmatprep.mubr.f32.mxu0 0.0
        %379 = vmatmul.mubr.f32.gmra.mxu0 %v263
        %v380 = vpop.f32.mrf.mxu0
        %v381 = vadd.f32 0.0, %v380
        %v382 = vpop.f32.mrf.mxu0
        %383 = vmatprep.mubr.f32.mxu0 0.0
        %384 = vmatmul.mubr.f32.gmra.mxu0 %v266
        %v385 = vpop.f32.mrf.mxu0
        %v386 = vadd.f32 0.0, %v385
        %v387 = vpop.f32.mrf.mxu0
        %388 = vmatprep.mubr.f32.mxu0 0.0
        %389 = vmatmul.mubr.f32.gmra.mxu0 %v269
        %v390 = vpop.f32.mrf.mxu0
        %v391 = vadd.f32 0.0, %v390
        %v392 = vpop.f32.mrf.mxu0
        %393 = vmatprep.mubr.f32.mxu0 0.0
        %394 = vmatmul.mubr.f32.gmra.mxu0 %v272
        %v395 = vpop.f32.mrf.mxu0
        %v396 = vadd.f32 0.0, %v395
        %v397 = vpop.f32.mrf.mxu0
        %398 = vmatprep.mubr.f32.mxu0 0.0
        %399 = vmatmul.mubr.f32.gmra.mxu0 %v275
        %v400 = vpop.f32.mrf.mxu0
        %v401 = vadd.f32 0.0, %v400
        %v402 = vpop.f32.mrf.mxu0
        %403 = vmatprep.mubr.f32.mxu0 0.0
        %404 = vmatmul.mubr.f32.gmra.mxu0 %v278
        %v405 = vpop.f32.mrf.mxu0
        %v406 = vadd.f32 0.0, %v405
        %v407 = vpop.f32.mrf.mxu0
        %408 = vmatprep.mubr.f32.mxu0 0.0
        %409 = vmatmul.mubr.f32.gmra.mxu0 %v281
        %v410 = vpop.f32.mrf.mxu0
        %v411 = vadd.f32 0.0, %v410
        %v412 = vpop.f32.mrf.mxu0
        %413 = vmatprep.mubr.f32.mxu0 0.0
        %414 = vmatmul.mubr.f32.gmra.mxu0 %v284
        %v415 = vpop.f32.mrf.mxu0
        %v416 = vadd.f32 0.0, %v415
        %v417 = vpop.f32.mrf.mxu0
        %418 = vmatprep.mubr.f32.mxu0 0.0
        %419 = vmatmul.mubr.f32.gmra.mxu0 %v287
        %v420 = vpop.f32.mrf.mxu0
        %v421 = vadd.f32 0.0, %v420
        %v422 = vpop.f32.mrf.mxu0
        %423 = vmatprep.mubr.f32.mxu0 0.0
        %424 = vmatmul.mubr.f32.gmra.mxu0 %v290
        %v425 = vpop.f32.mrf.mxu0
        %v426 = vadd.f32 0.0, %v425
        %v427 = vpop.f32.mrf.mxu0
        %428 = vmatprep.mubr.f32.mxu0 0.0
        %429 = vmatmul.mubr.f32.gmra.mxu0 %v293
        %v430 = vpop.f32.mrf.mxu0
        %v431 = vadd.f32 0.0, %v430
        %v432 = vpop.f32.mrf.mxu0
        %433 = vmatprep.mubr.f32.mxu0 0.0
        %434 = vmatmul.mubr.f32.gmra.mxu0 %v296
        %v435 = vpop.f32.mrf.mxu0
        %v436 = vadd.f32 0.0, %v435
        %v437 = vpop.f32.mrf.mxu0
        %438 = vmatprep.mubr.f32.mxu0 0.0
        %439 = vmatmul.mubr.f32.gmra.mxu0 %v299
        %v440 = vpop.f32.mrf.mxu0
        %v441 = vadd.f32 0.0, %v440
        %v442 = vpop.f32.mrf.mxu0
        %443 = vmatprep.mubr.f32.mxu0 0.0
        %444 = vmatmul.mubr.f32.gmra.mxu0 %v302
        %v445 = vpop.f32.mrf.mxu0
        %v446 = vadd.f32 0.0, %v445
        %v447 = vpop.f32.mrf.mxu0
        %448 = vmatprep.mubr.f32.mxu0 0.0
        %449 = vmatmul.mubr.f32.gmra.mxu0 %v305
        %v450 = vpop.f32.mrf.mxu0
        %v451 = vadd.f32 0.0, %v450
        %v452 = vpop.f32.mrf.mxu0
        %453 = vmatprep.mubr.f32.mxu0 0.0
        %454 = vmatmul.mubr.f32.gmra.mxu0 %v308
        %v455 = vpop.f32.mrf.mxu0
        %v456 = vadd.f32 0.0, %v455
        %v457 = vpop.f32.mrf.mxu0
        %458 = vdwg.mxu0
        %v459 = vld [vmem:[%s2] sm:$0xf]
        %460 = vrot.lane.b32.xlu0 %v240, 112
        %v461 = vpop.permute.xlu0 %460
        %462 = vrot.lane.b32.xlu0 %v241, 112
        %v463 = vpop.permute.xlu0 %462
        %464 = vrot.lane.b32.xlu0 %v242, 112
        %v465 = vpop.permute.xlu0 %464
        %466 = vrot.lane.b32.xlu0 %v243, 112
        %v467 = vpop.permute.xlu0 %466
        %468 = vrot.lane.b32.xlu0 %v244, 112
        %v469 = vpop.permute.xlu0 %468
        %470 = vrot.lane.b32.xlu0 %v245, 112
        %v471 = vpop.permute.xlu0 %470
        %472 = vrot.lane.b32.xlu0 %v246, 112
        %v473 = vpop.permute.xlu0 %472
        %474 = vrot.lane.b32.xlu0 %v247, 112
        %v475 = vpop.permute.xlu0 %474
        %476 = vrot.lane.b32.xlu0 %v248, 112
        %v477 = vpop.permute.xlu0 %476
        %478 = vrot.lane.b32.xlu0 %v249, 112
        %v479 = vpop.permute.xlu0 %478
        %480 = vrot.lane.b32.xlu0 %v250, 112
        %v481 = vpop.permute.xlu0 %480
        %482 = vrot.lane.b32.xlu0 %v251, 112
        %v483 = vpop.permute.xlu0 %482
        %484 = vrot.lane.b32.xlu0 %v252, 112
        %v485 = vpop.permute.xlu0 %484
        %486 = vrot.lane.b32.xlu0 %v253, 112
        %v487 = vpop.permute.xlu0 %486
        %488 = vrot.lane.b32.xlu0 %v254, 112
        %v489 = vpop.permute.xlu0 %488
        %490 = vrot.lane.b32.xlu0 %v255, 112
        %v491 = vpop.permute.xlu0 %490
        %vm492 = vcmask 31744
        %v493 = vsel %vm492, %v461, 0
        %v495 = vsel %vm492, %v463, 0
        %v497 = vsel %vm492, %v465, 0
        %v499 = vsel %vm492, %v467, 0
        %v501 = vsel %vm492, %v469, 0
        %v503 = vsel %vm492, %v471, 0
        %v505 = vsel %vm492, %v473, 0
        %v507 = vsel %vm492, %v475, 0
        %v509 = vsel %vm492, %v477, 0
        %v511 = vsel %vm492, %v479, 0
        %v513 = vsel %vm492, %v481, 0
        %v515 = vsel %vm492, %v483, 0
        %v517 = vsel %vm492, %v485, 0
        %v519 = vsel %vm492, %v487, 0
        %v521 = vsel %vm492, %v489, 0
        %v523 = vsel %vm492, %v491, 0
        %v526 = vsel %vm310, %v459, 0
        %528 = vmatprep.subr.mxu0 0.0
        %529 = vmatpush1.msra.mxu0 0.0
        %530 = vmatprep.subr.mxu0 0.0
        %531 = vmatpush1.msra.mxu0 0.0
        %532 = vmatprep.subr.mxu0 0.0
        %533 = vmatpush1.msra.mxu0 0.0
        %534 = vmatprep.subr.mxu0 0.0
        %535 = vmatpush1.msra.mxu0 0.0
        %536 = vmatprep.subr.mxu0 0.0
        %537 = vmatpush1.msra.mxu0 0.0
        %538 = vmatprep.subr.mxu0 0.0
        %539 = vmatpush1.msra.mxu0 0.0
        %540 = vmatprep.subr.mxu0 0.0
        %541 = vmatpush1.msra.mxu0 0.0
        %542 = vmatprep.subr.mxu0 0.0
        %543 = vmatpush1.msra.mxu0 0.0
        %544 = vmatprep.subr.mxu0 0.0
        %545 = vmatpush1.msra.mxu0 0.0
        %546 = vmatprep.subr.mxu0 0.0
        %547 = vmatpush1.msra.mxu0 0.0
        %548 = vmatprep.subr.mxu0 0.0
        %549 = vmatpush1.msra.mxu0 0.0
        %550 = vmatprep.subr.mxu0 0.0
        %551 = vmatpush1.msra.mxu0 0.0
        %552 = vmatprep.subr.mxu0 0.0
        %553 = vmatpush1.msra.mxu0 0.0
        %554 = vmatprep.subr.mxu0 0.0
        %555 = vmatpush1.msra.mxu0 0.0
        %556 = vmatprep.subr.mxu0 0.0
        %557 = vmatpush1.msra.mxu0 0.0
        %558 = vmatprep.subr.mxu0 0.0
        %559 = vmatpush1.msra.mxu0 %v526
        %560 = vmatprep.subr.mxu0 0.0
        %561 = vmatpush2.msra.mxu0 0.0
        %562 = vmatprep.subr.mxu0 0.0
        %563 = vmatpush2.msra.mxu0 0.0
        %564 = vmatprep.subr.mxu0 0.0
        %565 = vmatpush2.msra.mxu0 0.0
        %566 = vmatprep.subr.mxu0 0.0
        %567 = vmatpush2.msra.mxu0 0.0
        %568 = vmatprep.subr.mxu0 0.0
        %569 = vmatpush2.msra.mxu0 0.0
        %570 = vmatprep.subr.mxu0 0.0
        %571 = vmatpush2.msra.mxu0 0.0
        %572 = vmatprep.subr.mxu0 0.0
        %573 = vmatpush2.msra.mxu0 0.0
        %574 = vmatprep.subr.mxu0 0.0
        %575 = vmatpush2.msra.mxu0 0.0
        %576 = vmatprep.subr.mxu0 0.0
        %577 = vmatpush2.msra.mxu0 0.0
        %578 = vmatprep.subr.mxu0 0.0
        %579 = vmatpush2.msra.mxu0 0.0
        %580 = vmatprep.subr.mxu0 0.0
        %581 = vmatpush2.msra.mxu0 0.0
        %582 = vmatprep.subr.mxu0 0.0
        %583 = vmatpush2.msra.mxu0 0.0
        %584 = vmatprep.subr.mxu0 0.0
        %585 = vmatpush2.msra.mxu0 0.0
        %586 = vmatprep.subr.mxu0 0.0
        %587 = vmatpush2.msra.mxu0 0.0
        %588 = vmatprep.subr.mxu0 0.0
        %589 = vmatpush2.msra.mxu0 0.0
        %590 = vmatprep.subr.mxu0 0.0
        %591 = vmatpush2.msra.mxu0 0.0
        %592 = vmatprep.mubr.f32.mxu0 0.0
        %593 = vmatmul.mubr.f32.gmra.mxu0 %v493
        %v594 = vpop.f32.mrf.mxu0
        %v595 = vadd.f32 0.0, %v594
        %v596 = vpop.f32.mrf.mxu0
        %597 = vmatprep.mubr.f32.mxu0 0.0
        %598 = vmatmul.mubr.f32.gmra.mxu0 %v495
        %v599 = vpop.f32.mrf.mxu0
        %v600 = vadd.f32 0.0, %v599
        %v601 = vpop.f32.mrf.mxu0
        %602 = vmatprep.mubr.f32.mxu0 0.0
        %603 = vmatmul.mubr.f32.gmra.mxu0 %v497
        %v604 = vpop.f32.mrf.mxu0
        %v605 = vadd.f32 0.0, %v604
        %v606 = vpop.f32.mrf.mxu0
        %607 = vmatprep.mubr.f32.mxu0 0.0
        %608 = vmatmul.mubr.f32.gmra.mxu0 %v499
        %v609 = vpop.f32.mrf.mxu0
        %v610 = vadd.f32 0.0, %v609
        %v611 = vpop.f32.mrf.mxu0
        %612 = vmatprep.mubr.f32.mxu0 0.0
        %613 = vmatmul.mubr.f32.gmra.mxu0 %v501
        %v614 = vpop.f32.mrf.mxu0
        %v615 = vadd.f32 0.0, %v614
        %v616 = vpop.f32.mrf.mxu0
        %617 = vmatprep.mubr.f32.mxu0 0.0
        %618 = vmatmul.mubr.f32.gmra.mxu0 %v503
        %v619 = vpop.f32.mrf.mxu0
        %v620 = vadd.f32 0.0, %v619
        %v621 = vpop.f32.mrf.mxu0
        %622 = vmatprep.mubr.f32.mxu0 0.0
        %623 = vmatmul.mubr.f32.gmra.mxu0 %v505
        %v624 = vpop.f32.mrf.mxu0
        %v625 = vadd.f32 0.0, %v624
        %v626 = vpop.f32.mrf.mxu0
        %627 = vmatprep.mubr.f32.mxu0 0.0
        %628 = vmatmul.mubr.f32.gmra.mxu0 %v507
        %v629 = vpop.f32.mrf.mxu0
        %v630 = vadd.f32 0.0, %v629
        %v631 = vpop.f32.mrf.mxu0
        %632 = vmatprep.mubr.f32.mxu0 0.0
        %633 = vmatmul.mubr.f32.gmra.mxu0 %v509
        %v634 = vpop.f32.mrf.mxu0
        %v635 = vadd.f32 0.0, %v634
        %v636 = vpop.f32.mrf.mxu0
        %637 = vmatprep.mubr.f32.mxu0 0.0
        %638 = vmatmul.mubr.f32.gmra.mxu0 %v511
        %v639 = vpop.f32.mrf.mxu0
        %v640 = vadd.f32 0.0, %v639
        %v641 = vpop.f32.mrf.mxu0
        %642 = vmatprep.mubr.f32.mxu0 0.0
        %643 = vmatmul.mubr.f32.gmra.mxu0 %v513
        %v644 = vpop.f32.mrf.mxu0
        %v645 = vadd.f32 0.0, %v644
        %v646 = vpop.f32.mrf.mxu0
        %647 = vmatprep.mubr.f32.mxu0 0.0
        %648 = vmatmul.mubr.f32.gmra.mxu0 %v515
        %v649 = vpop.f32.mrf.mxu0
        %v650 = vadd.f32 0.0, %v649
        %v651 = vpop.f32.mrf.mxu0
        %652 = vmatprep.mubr.f32.mxu0 0.0
        %653 = vmatmul.mubr.f32.gmra.mxu0 %v517
        %v654 = vpop.f32.mrf.mxu0
        %v655 = vadd.f32 0.0, %v654
        %v656 = vpop.f32.mrf.mxu0
        %657 = vmatprep.mubr.f32.mxu0 0.0
        %658 = vmatmul.mubr.f32.gmra.mxu0 %v519
        %v659 = vpop.f32.mrf.mxu0
        %v660 = vadd.f32 0.0, %v659
        %v661 = vpop.f32.mrf.mxu0
        %662 = vmatprep.mubr.f32.mxu0 0.0
        %663 = vmatmul.mubr.f32.gmra.mxu0 %v521
        %v664 = vpop.f32.mrf.mxu0
        %v665 = vadd.f32 0.0, %v664
        %v666 = vpop.f32.mrf.mxu0
        %667 = vmatprep.mubr.f32.mxu0 0.0
        %668 = vmatmul.mubr.f32.gmra.mxu0 %v523
        %v669 = vpop.f32.mrf.mxu0
        %v670 = vadd.f32 0.0, %v669
        %v671 = vpop.f32.mrf.mxu0
        %672 = vdwg.mxu0
        %673 = vst [vmem:[%s217] sm:$0xff] %v381
        %674 = vst [vmem:[%s217 + $0x8] sm:$0xff] %v386
        %675 = vst [vmem:[%s217 + $0x10] sm:$0xff] %v391
        %676 = vst [vmem:[%s217 + $0x18] sm:$0xff] %v396
        %677 = vst [vmem:[%s217 + $0x20] sm:$0xff] %v401
        %678 = vst [vmem:[%s217 + $0x28] sm:$0xff] %v406
        %679 = vst [vmem:[%s217 + $0x30] sm:$0xff] %v411
        %680 = vst [vmem:[%s217 + $0x38] sm:$0xff] %v416
        %681 = vst [vmem:[%s217 + $0x40] sm:$0xff] %v421
        %682 = vst [vmem:[%s217 + $0x48] sm:$0xff] %v426
        %683 = vst [vmem:[%s217 + $0x50] sm:$0xff] %v431
        %684 = vst [vmem:[%s217 + $0x58] sm:$0xff] %v436
        %685 = vst [vmem:[%s217 + $0x60] sm:$0xff] %v441
        %686 = vst [vmem:[%s217 + $0x68] sm:$0xff] %v446
        %687 = vst [vmem:[%s217 + $0x70] sm:$0xff] %v451
        %688 = vst [vmem:[%s217 + $0x78] sm:$0xff] %v456
        %689 = vst [vmem:[%s224] sm:$0xff] %v595
        %690 = vst [vmem:[%s224 + $0x8] sm:$0xff] %v600
        %691 = vst [vmem:[%s224 + $0x10] sm:$0xff] %v605
        %692 = vst [vmem:[%s224 + $0x18] sm:$0xff] %v610
        %693 = vst [vmem:[%s224 + $0x20] sm:$0xff] %v615
        %694 = vst [vmem:[%s224 + $0x28] sm:$0xff] %v620
        %695 = vst [vmem:[%s224 + $0x30] sm:$0xff] %v625
        %696 = vst [vmem:[%s224 + $0x38] sm:$0xff] %v630
        %697 = vst [vmem:[%s224 + $0x40] sm:$0xff] %v635
        %698 = vst [vmem:[%s224 + $0x48] sm:$0xff] %v640
        %699 = vst [vmem:[%s224 + $0x50] sm:$0xff] %v645
        %700 = vst [vmem:[%s224 + $0x58] sm:$0xff] %v650
        %701 = vst [vmem:[%s224 + $0x60] sm:$0xff] %v655
        %702 = vst [vmem:[%s224 + $0x68] sm:$0xff] %v660
        %703 = vst [vmem:[%s224 + $0x70] sm:$0xff] %v665
        %704 = vst [vmem:[%s224 + $0x78] sm:$0xff] %v670
        %v705 = vld [vmem:[#allocation6] sm:$0xf]
        %v706 = vadd.f32 %v381, %v386
        %v707 = vadd.f32 %v706, %v391
        %v708 = vadd.f32 %v707, %v396
        %v709 = vadd.f32 %v708, %v401
        %v710 = vadd.f32 %v709, %v406
        %v711 = vadd.f32 %v710, %v411
        %v712 = vadd.f32 %v711, %v416
        %v713 = vadd.f32 %v712, %v421
        %v714 = vadd.f32 %v713, %v426
        %v715 = vadd.f32 %v714, %v431
        %v716 = vadd.f32 %v715, %v436
        %v717 = vadd.f32 %v716, %v441
        %v718 = vadd.f32 %v717, %v446
        %v719 = vadd.f32 %v718, %v451
        %v720 = vadd.f32 %v719, %v456
        %v721 = vrot.slane %v720, 4
        %v722 = vadd.f32 %v720, %v721
        %v723 = vrot.slane %v722, 2
        %v724 = vadd.f32 %v722, %v723
        %v725 = vrot.slane %v724, 1
        %v726 = vadd.f32 %v724, %v725
        %v727 = vmul.f32 %v381, %v381
        %v728 = vmul.f32 %v386, %v386
        %v729 = vmul.f32 %v391, %v391
        %v730 = vmul.f32 %v396, %v396
        %v731 = vmul.f32 %v401, %v401
        %v732 = vmul.f32 %v406, %v406
        %v733 = vmul.f32 %v411, %v411
        %v734 = vmul.f32 %v416, %v416
        %v735 = vmul.f32 %v421, %v421
        %v736 = vmul.f32 %v426, %v426
        %v737 = vmul.f32 %v431, %v431
        %v738 = vmul.f32 %v436, %v436
        %v739 = vmul.f32 %v441, %v441
        %v740 = vmul.f32 %v446, %v446
        %v741 = vmul.f32 %v451, %v451
        %v742 = vmul.f32 %v456, %v456
        %v743 = vadd.f32 %v727, %v728
        %v744 = vadd.f32 %v743, %v729
        %v745 = vadd.f32 %v744, %v730
        %v746 = vadd.f32 %v745, %v731
        %v747 = vadd.f32 %v746, %v732
        %v748 = vadd.f32 %v747, %v733
        %v749 = vadd.f32 %v748, %v734
        %v750 = vadd.f32 %v749, %v735
        %v751 = vadd.f32 %v750, %v736
        %v752 = vadd.f32 %v751, %v737
        %v753 = vadd.f32 %v752, %v738
        %v754 = vadd.f32 %v753, %v739
        %v755 = vadd.f32 %v754, %v740
        %v756 = vadd.f32 %v755, %v741
        %v757 = vadd.f32 %v756, %v742
        %v758 = vrot.slane %v757, 4
        %v759 = vadd.f32 %v757, %v758
        %v760 = vrot.slane %v759, 2
        %v761 = vadd.f32 %v759, %v760
        %v762 = vrot.slane %v761, 1
        %v763 = vadd.f32 %v761, %v762
        %v764 = vadd.f32 %v595, %v600
        %v765 = vadd.f32 %v764, %v605
        %v766 = vadd.f32 %v765, %v610
        %v767 = vadd.f32 %v766, %v615
        %v768 = vadd.f32 %v767, %v620
        %v769 = vadd.f32 %v768, %v625
        %v770 = vadd.f32 %v769, %v630
        %v771 = vadd.f32 %v770, %v635
        %v772 = vadd.f32 %v771, %v640
        %v773 = vadd.f32 %v772, %v645
        %v774 = vadd.f32 %v773, %v650
        %v775 = vadd.f32 %v774, %v655
        %v776 = vadd.f32 %v775, %v660
        %v777 = vadd.f32 %v776, %v665
        %v778 = vadd.f32 %v777, %v670
        %v779 = vrot.slane %v778, 4
        %v780 = vadd.f32 %v778, %v779
        %v781 = vrot.slane %v780, 2
        %v782 = vadd.f32 %v780, %v781
        %v783 = vrot.slane %v782, 1
        %v784 = vadd.f32 %v782, %v783
        %v785 = vmul.f32 %v595, %v595
        %v786 = vmul.f32 %v600, %v600
        %v787 = vmul.f32 %v605, %v605
        %v788 = vmul.f32 %v610, %v610
        %v789 = vmul.f32 %v615, %v615
        %v790 = vmul.f32 %v620, %v620
        %v791 = vmul.f32 %v625, %v625
        %v792 = vmul.f32 %v630, %v630
        %v793 = vmul.f32 %v635, %v635
        %v794 = vmul.f32 %v640, %v640
        %v795 = vmul.f32 %v645, %v645
        %v796 = vmul.f32 %v650, %v650
        %v797 = vmul.f32 %v655, %v655
        %v798 = vmul.f32 %v660, %v660
        %v799 = vmul.f32 %v665, %v665
        %v800 = vmul.f32 %v670, %v670
        %v801 = vadd.f32 %v785, %v786
        %v802 = vadd.f32 %v801, %v787
        %v803 = vadd.f32 %v802, %v788
        %v804 = vadd.f32 %v803, %v789
        %v805 = vadd.f32 %v804, %v790
        %v806 = vadd.f32 %v805, %v791
        %v807 = vadd.f32 %v806, %v792
        %v808 = vadd.f32 %v807, %v793
        %v809 = vadd.f32 %v808, %v794
        %v810 = vadd.f32 %v809, %v795
        %v811 = vadd.f32 %v810, %v796
        %v812 = vadd.f32 %v811, %v797
        %v813 = vadd.f32 %v812, %v798
        %v814 = vadd.f32 %v813, %v799
        %v815 = vadd.f32 %v814, %v800
        %v816 = vrot.slane %v815, 4
        %v817 = vadd.f32 %v815, %v816
        %v818 = vrot.slane %v817, 2
        %v819 = vadd.f32 %v817, %v818
        %v820 = vrot.slane %v819, 1
        %v821 = vadd.f32 %v819, %v820
        %vm822 = vcmask 1040384
        %v823 = vsel %vm822, %v726, %v763
        %vm824 = vcmask 1041408
        %v825 = vsel %vm824, %v823, %v784
        %vm826 = vcmask 1042432
        %v827 = vsel %vm826, %v825, %v821
        %v828 = vadd.f32 %v705, %v827
        %829 = vst [vmem:[#allocation6] sm:$0xf] %v828
        %s830 = sand.u32 %s99, 1
        %s831 = scalar_lea.sflag [#allocation3], %s830
        %s832 = sand.u32 %s99, 1
        %s833 = smul.addr %s832, 128
        %s834 = scalar_lea.vmem [#allocation2], %s833
        %s835 = sand.u32 %s23, 1
        %s836 = scalar_lea.sflag [#allocation5], %s835
        %s837 = sand.u32 %s125, 1
        %s838 = smul.addr %s837, 128
        %s839 = scalar_lea.vmem [#allocation4], %s838
        // Predicated region
        $region37: #{tpu_custom_call.1} parent=31 // pred_check
          %p840 = pneg %p109
        $region38: #{tpu_custom_call.1} parent=31 // pred_check_branch
          %842 = sbr.rel (%p840) target = $region40
        $region39: #{tpu_custom_call.1} parent=31 // pred_region
          %s843 = smul.u32 16, %s23
          %s845 = ssub.s32 2048, 2048
          %846 = vsyncadd %s831, %s845
          %s847 = smul.addr %s843, 128
          %s848 = scalar_lea.hbm %s3, %s847
          %s849 = sshll.u32 %s834, 4
          %s850 = int_to_ptr.vmem [resolvable:$true] %s849
          %855 = dma.vmem_to_hbm [thread:$0]  %s850, 2048, %s848, %s831, 128, 128, 8
        $region40: #{tpu_custom_call.1} parent=31 // pred_fallthru
          _
        // Predicated region
        $region41: #{tpu_custom_call.1} parent=31 // pred_check
          %p856 = pneg %p135
        $region42: #{tpu_custom_call.1} parent=31 // pred_check_branch
          %858 = sbr.rel (%p856) target = $region44
        $region43: #{tpu_custom_call.1} parent=31 // pred_region
          %s859 = smul.u32 16, %s23
          %s861 = ssub.s32 2048, 2048
          %862 = vsyncadd %s836, %s861
          %s863 = smul.addr %s859, 128
          %s864 = scalar_lea.hbm %s4, %s863
          %s865 = sshll.u32 %s839, 4
          %s866 = int_to_ptr.vmem [resolvable:$true] %s865
          %871 = dma.vmem_to_hbm [thread:$0]  %s866, 2048, %s864, %s836, 128, 128, 8
        $region44: #{tpu_custom_call.1} parent=31 // pred_fallthru
          _
        // Predicated region
        $region45: #{tpu_custom_call.1} parent=31 // pred_check
          %p872 = pneg %p156
        $region46: #{tpu_custom_call.1} parent=31 // pred_check_branch
          %874 = sbr.rel (%p872) target = $region48
        $region47: #{tpu_custom_call.1} parent=31 // pred_region
          %s876 = ssub.s32 64, 64
          %877 = vsyncadd [#allocation5], %s876
          %s879 = sshll.u32 [#allocation6], 4
          %s880 = int_to_ptr.vmem [resolvable:$true] %s879
          %882 = dma.vmem_to_hbm [thread:$0]  %s880, 64, %s5, [#allocation5]
        $region48: #{tpu_custom_call.1} parent=31 // pred_fallthru
          _
        // Predicated region
        $region49: #{tpu_custom_call.1} parent=31 // pred_check
          %p883 = pneg %p156
        $region50: #{tpu_custom_call.1} parent=31 // pred_check_branch
          %885 = sbr.rel (%p883) target = $region52
        $region51: #{tpu_custom_call.1} parent=31 // pred_region
          %886 = dma.done [#allocation5], 64
        $region52: #{tpu_custom_call.1} parent=31 // pred_fallthru
          _
      $region32: #{tpu_custom_call.1} parent=5 // pred_fallthru
        _
      %p887 = scmp.le.s32.totalorder 2, %s18
      // Predicated region
      $region53: #{tpu_custom_call.1} parent=5 // pred_check
        %p888 = pneg %p887
      $region54: #{tpu_custom_call.1} parent=5 // pred_check_branch
        %890 = sbr.rel (%p888) target = $region56
      $region55: #{tpu_custom_call.1} parent=5 // pred_region
        %s891 = ssub.s32 %s18, 2
        // Predicated region
        $region57: #{tpu_custom_call.1} parent=55 // pred_check
          %p892 = pneg %p115
        $region58: #{tpu_custom_call.1} parent=55 // pred_check_branch
          %894 = sbr.rel (%p892) target = $region60
        $region59: #{tpu_custom_call.1} parent=55 // pred_region
          %s895 = sand.u32 %s100, 1
          %s896 = scalar_lea.sflag [#allocation3], %s895
          %s897 = sand.u32 %s100, 1
          %s898 = smul.addr %s897, 128
          %s899 = scalar_lea.vmem [#allocation2], %s898
          %900 = dma.done %s896, 2048
        $region60: #{tpu_custom_call.1} parent=55 // pred_fallthru
          _
        // Predicated region
        $region61: #{tpu_custom_call.1} parent=55 // pred_check
          %p901 = pneg %p141
        $region62: #{tpu_custom_call.1} parent=55 // pred_check_branch
          %903 = sbr.rel (%p901) target = $region64
        $region63: #{tpu_custom_call.1} parent=55 // pred_region
          %s904 = sand.u32 %s24, 1
          %s905 = scalar_lea.sflag [#allocation5], %s904
          %s906 = sand.u32 %s126, 1
          %s907 = smul.addr %s906, 128
          %s908 = scalar_lea.vmem [#allocation4], %s907
          %909 = dma.done %s905, 2048
        $region64: #{tpu_custom_call.1} parent=55 // pred_fallthru
          _
      $region56: #{tpu_custom_call.1} parent=5 // pred_fallthru
        _
    $region6: #{tpu_custom_call.1} parent=1 // loop_footer
      %s22 = sadd.s32 1, %s18
    $region7: #{tpu_custom_call.1} parent=1 // loop_footer_branch
      %17 = sbr.rel target = $region3
    $region8: #{tpu_custom_call.1} parent=1 // loop_exit
      _
    %910 = vsyncpa [#allocation3], 1
    %s911 = scalar_lea.sflag [#allocation3], 1
    %912 = vsyncpa %s911, 1
    %913 = vsyncpa [#allocation5], 1
    %s914 = scalar_lea.sflag [#allocation5], 1
    %915 = vsyncpa %s914, 1

</llo_original>
